<compile_context>
chip_gen: v5e
topology: v5e:2x2
jax: 0.10.0
libtpu: 0.0.40
codegen_flags: <defaults>
</compile_context>

<pallas_src>
import jax
import jax.numpy as jnp
from jax.experimental import pallas as pl
from jax.experimental.pallas import tpu as pltpu

C_OUT = 50            # out_channels per filter size
KSIZES = (3, 4, 5)    # conv kernel sizes
K_MAX = max(KSIZES)
N_PAD = 256           # 3*C_OUT = 150 padded to a lane-aligned width
N_OUT_PAD = 128       # fc output 50 padded to one full lane group


def _round_up(v, m):
    return (v + m - 1) // m * m


def _im2col_k5(x_pad, l_out):
    # x_pad: (B, C, L+2) -> (B, l_out, C*5) with patch[b,t,c*5+j] = x_pad[b,c,t+j]
    B, C, _ = x_pad.shape
    cols = jnp.stack([x_pad[:, :, j:j + l_out] for j in range(K_MAX)], axis=-1)  # (B,C,l_out,5)
    return jnp.transpose(cols, (0, 2, 1, 3)).reshape(B, l_out, C * K_MAX)


def cnn_classifier_forward(x, params, *, b_tile=None, compute_dtype=jnp.float32):
    """x: (B, C_in, L) float32. Returns (B, 50) float32.

    compute_dtype=jnp.bfloat16 halves HBM/VMEM traffic and MXU passes on
    v6e/v7x; fp32 is kept as the default so results match the fp32 reference.
    """
    B, C_in, L = x.shape
    K = C_in * K_MAX
    l_out = L - 3 + 1                 # k=3 output length == fused patch rows
    l_out_pad = _round_up(l_out, 8)   # sublane-aligned time axis

    if b_tile is None:
        b_tile = B if B <= 128 else 128   # one tile for small B; 128-row tiles otherwise
    b_pad = _round_up(B, b_tile)
    n_tiles = b_pad // b_tile
    m_rows = b_tile * l_out_pad

    # ---------------- host-side prep (pure data movement) ----------------
    # Pad batch to a tile multiple and right-pad L by 2 zeros so k=5 windows
    # exist for every t in [0, l_out).
    x_p = jnp.pad(x, ((0, b_pad - B), (0, 0), (0, K_MAX - 3)))
    patches = _im2col_k5(x_p, l_out)                                   # (b_pad, l_out, K)
    patches = jnp.pad(patches, ((0, 0), (0, l_out_pad - l_out), (0, 0)))
    patches = patches.reshape(b_pad * l_out_pad, K).astype(compute_dtype)

    # Fused conv weight/bias: zero-pad each kernel to width 5 along K, concat along N.
    w_cols, b_cols = [], []
    for k in KSIZES:
        w = params[f"conv{k}_w"]                                       # (C_OUT, C_in, k)
        w = jnp.pad(w, ((0, 0), (0, 0), (0, K_MAX - k)))               # (C_OUT, C_in, 5)
        w_cols.append(w.reshape(C_OUT, K).T)                           # (K, C_OUT)
        b_cols.append(params[f"conv{k}_b"])
    w_fused = jnp.pad(jnp.concatenate(w_cols, axis=1),
                      ((0, 0), (0, N_PAD - 3 * C_OUT))).astype(compute_dtype)   # (K, N_PAD)
    b_fused = jnp.pad(jnp.concatenate(b_cols),
                      (0, N_PAD - 3 * C_OUT)).reshape(1, N_PAD).astype(jnp.float32)

    # Validity mask per (time row, column group). Post-ReLU values are >= 0 so
    # zeroing invalid rows never changes the per-sample max.
    valid = jnp.zeros((N_PAD,), jnp.int32)
    valid = valid.at[0 * C_OUT:1 * C_OUT].set(l_out)        # k=3: all rows valid
    valid = valid.at[1 * C_OUT:2 * C_OUT].set(l_out - 1)    # k=4: last row invalid
    valid = valid.at[2 * C_OUT:3 * C_OUT].set(l_out - 2)    # k=5: last two rows invalid
    mask = (jnp.arange(l_out_pad)[:, None] < valid[None, :]).astype(jnp.float32)

    # fc weight/bias, padded to (N_PAD, N_OUT_PAD) / (1, N_OUT_PAD).
    fc_wt = jnp.pad(params["fc_w"].T,
                    ((0, N_PAD - 3 * C_OUT), (0, N_OUT_PAD - C_OUT))).astype(jnp.float32)
    fc_b = jnp.pad(params["fc_b"], (0, N_OUT_PAD - C_OUT)).reshape(1, N_OUT_PAD)

    # ---------------- Pallas kernel ----------------
    def kernel(p_ref, w_ref, b_ref, mask_ref, fwt_ref, fb_ref, out_ref):
        # One MXU matmul covers all three convs for the whole batch tile.
        h = jnp.dot(p_ref[...], w_ref[...],
                    preferred_element_type=jnp.float32)                 # (m_rows, N_PAD)
        h = jnp.maximum(h + b_ref[...], 0.0)                            # bias + ReLU
        h = h.reshape(b_tile, l_out_pad, N_PAD) * mask_ref[...]         # zero invalid rows
        pooled = jnp.max(h, axis=1)                                     # (b_tile, N_PAD)
        out = jnp.dot(pooled, fwt_ref[...],
                      preferred_element_type=jnp.float32) + fb_ref[...]  # (b_tile, N_OUT_PAD)
        out_ref[...] = out

    itemsize = jnp.dtype(compute_dtype).itemsize
    flops = 2 * b_pad * l_out_pad * K * N_PAD + 2 * b_pad * N_PAD * N_OUT_PAD
    bytes_accessed = (b_pad * l_out_pad * K * itemsize        # patches
                      + K * N_PAD * itemsize                  # fused conv weight
                      + N_PAD * N_OUT_PAD * 4                 # fc weight
                      + b_pad * N_OUT_PAD * 4)                # output

    out = pl.pallas_call(
        kernel,
        out_shape=jax.ShapeDtypeStruct((b_pad, N_OUT_PAD), jnp.float32),
        grid=(n_tiles,),
        in_specs=[
            pl.BlockSpec((m_rows, K), lambda i: (i, 0)),          # patch block per batch tile
            pl.BlockSpec((K, N_PAD), lambda i: (0, 0)),           # fused conv weight
            pl.BlockSpec((1, N_PAD), lambda i: (0, 0)),           # fused conv bias
            pl.BlockSpec((l_out_pad, N_PAD), lambda i: (0, 0)),   # validity mask
            pl.BlockSpec((N_PAD, N_OUT_PAD), lambda i: (0, 0)),   # fc weight (padded, transposed)
            pl.BlockSpec((1, N_OUT_PAD), lambda i: (0, 0)),       # fc bias (padded)
        ],
        out_specs=pl.BlockSpec((b_tile, N_OUT_PAD), lambda i: (i, 0)),
        compiler_params=pltpu.CompilerParams(
            dimension_semantics=("parallel",)),
        cost_estimate=pl.CostEstimate(
            flops=flops, transcendentals=0, bytes_accessed=bytes_accessed),
    )(patches, w_fused, b_fused, mask, fc_wt, fc_b)

    return out[:B, :C_OUT]


# ---------------- pure-JAX reference (matches PyTorch semantics) ----------------
def _im2col_1d(x, k):
    B, C, L = x.shape
    l_out = L - k + 1
    cols = jnp.stack([x[:, :, j:j + l_out] for j in range(k)], axis=-1)  # (B,C,l_out,k)
    return jnp.transpose(cols, (0, 2, 1, 3)).reshape(B, l_out, C * k)


def reference_forward(x, params):
    feats = []
    for k in KSIZES:
        p = _im2col_1d(x, k)                                   # (B, L_out, C_in*k)
        w = params[f"conv{k}_w"].reshape(C_OUT, -1).T
        h = jnp.einsum("btp,pc->btc", p, w) + params[f"conv{k}_b"][None, None, :]
        h = jnp.maximum(h, 0.0)
        feats.append(jnp.max(h, axis=1))                       # (B, C_OUT)
    h = jnp.concatenate(feats, axis=-1)                        # (B, 150)
    return h @ params["fc_w"].T + params["fc_b"][None, :]


def init_params(key, in_channels):
    keys = jax.random.split(key, 8)
    params = {}
    for i, k in enumerate(KSIZES):
        params[f"conv{k}_w"] = 0.1 * jax.random.normal(
            keys[2 * i], (C_OUT, in_channels, k), jnp.float32)
        params[f"conv{k}_b"] = 0.1 * jax.random.normal(
            keys[2 * i + 1], (C_OUT,), jnp.float32)
    params["fc_w"] = 0.1 * jax.random.normal(keys[6], (C_OUT, 3 * C_OUT), jnp.float32)
    params["fc_b"] = 0.1 * jax.random.normal(keys[7], (C_OUT,), jnp.float32)
    return params


if __name__ == "__main__":
    B, C_IN, L = 2, 4, 16
    key = jax.random.PRNGKey(0)
    k_x, k_p = jax.random.split(key)
    x = jax.random.normal(k_x, (B, C_IN, L), jnp.float32)
    params = init_params(k_p, C_IN)

    out = cnn_classifier_forward(x, params)
    out = jax.block_until_ready(out)

    ref = reference_forward(x, params)
    assert out.shape == (B, C_OUT), out.shape
    assert jnp.allclose(out, ref, atol=1e-4, rtol=1e-4), (
        f"max abs err {jnp.max(jnp.abs(out - ref))}")
    print("KERNEL_OK")
</pallas_src>

<mosaic_0001>
module attributes {stable_mosaic.version = 11 : i64} {
  func.func @kernel(%arg0: i32, %arg1: memref<32x20xf32, #tpu.memory_space<vmem>>, %arg2: memref<20x256xf32, #tpu.memory_space<vmem>>, %arg3: memref<1x256xf32, #tpu.memory_space<vmem>>, %arg4: memref<16x256xf32, #tpu.memory_space<vmem>>, %arg5: memref<256x128xf32, #tpu.memory_space<vmem>>, %arg6: memref<1x128xf32, #tpu.memory_space<vmem>>, %arg7: memref<2x128xf32, #tpu.memory_space<vmem>>) attributes {dimension_semantics = [#tpu.dimension_semantics<parallel>], iteration_bounds = array<i64: 1>, scalar_prefetch = 0 : i64, scratch_operands = 0 : i64, tpu.core_type = #tpu.core_type<tc>, window_params = [{transform_indices = @transform_0, window_bounds = array<i64: 32, 20>}, {pipeline_mode = #tpu.pipeline_mode<synchronous>, transform_indices = @transform_1, window_bounds = array<i64: 20, 256>}, {pipeline_mode = #tpu.pipeline_mode<synchronous>, transform_indices = @transform_2, window_bounds = array<i64: 1, 256>}, {pipeline_mode = #tpu.pipeline_mode<synchronous>, transform_indices = @transform_3, window_bounds = array<i64: 16, 256>}, {pipeline_mode = #tpu.pipeline_mode<synchronous>, transform_indices = @transform_4, window_bounds = array<i64: 256, 128>}, {pipeline_mode = #tpu.pipeline_mode<synchronous>, transform_indices = @transform_5, window_bounds = array<i64: 1, 128>}, {transform_indices = @transform_6, window_bounds = array<i64: 2, 128>}]} {
    %c0 = arith.constant 0 : index
    %c0_0 = arith.constant 0 : index
    %0 = vector.load %arg1[%c0, %c0_0] : memref<32x20xf32, #tpu.memory_space<vmem>>, vector<32x20xf32>
    %c0_1 = arith.constant 0 : index
    %c0_2 = arith.constant 0 : index
    %1 = vector.load %arg2[%c0_1, %c0_2] : memref<20x256xf32, #tpu.memory_space<vmem>>, vector<20x256xf32>
    %cst = arith.constant dense<0.000000e+00> : vector<32x256xf32>
    %2 = tpu.matmul %0, %1, %cst {dimension_numbers = #tpu.dot_dimension_numbers<[1], [0], [0], [1], [0, 0, 1, 1], [], []>} : vector<32x20xf32>, vector<20x256xf32>, vector<32x256xf32> -> vector<32x256xf32>
    %c0_3 = arith.constant 0 : index
    %c0_4 = arith.constant 0 : index
    %3 = vector.load %arg3[%c0_3, %c0_4] : memref<1x256xf32, #tpu.memory_space<vmem>>, vector<1x256xf32>
    %4 = vector.broadcast %3 : vector<1x256xf32> to vector<32x256xf32>
    %5 = arith.addf %2, %4 : vector<32x256xf32>
    %cst_5 = arith.constant 0.000000e+00 : f32
    %6 = vector.broadcast %cst_5 : f32 to vector<32x256xf32>
    %7 = arith.maximumf %5, %6 : vector<32x256xf32>
    %8 = vector.shape_cast %7 : vector<32x256xf32> to vector<2x16x256xf32>
    %c0_6 = arith.constant 0 : index
    %c0_7 = arith.constant 0 : index
    %9 = vector.load %arg4[%c0_6, %c0_7] : memref<16x256xf32, #tpu.memory_space<vmem>>, vector<16x256xf32>
    %10 = vector.shape_cast %9 : vector<16x256xf32> to vector<1x16x256xf32>
    %11 = vector.broadcast %10 : vector<1x16x256xf32> to vector<2x16x256xf32>
    %12 = arith.mulf %8, %11 : vector<2x16x256xf32>
    %cst_8 = arith.constant dense<0xFF800000> : vector<2x256xf32>
    %13 = vector.multi_reduction <maximumf>, %12, %cst_8 [1] : vector<2x16x256xf32> to vector<2x256xf32>
    %c0_9 = arith.constant 0 : index
    %c0_10 = arith.constant 0 : index
    %14 = vector.load %arg5[%c0_9, %c0_10] : memref<256x128xf32, #tpu.memory_space<vmem>>, vector<256x128xf32>
    %cst_11 = arith.constant dense<0.000000e+00> : vector<2x128xf32>
    %15 = tpu.matmul %13, %14, %cst_11 {dimension_numbers = #tpu.dot_dimension_numbers<[1], [0], [0], [1], [0, 0, 1, 1], [], []>} : vector<2x256xf32>, vector<256x128xf32>, vector<2x128xf32> -> vector<2x128xf32>
    %c0_12 = arith.constant 0 : index
    %c0_13 = arith.constant 0 : index
    %16 = vector.load %arg6[%c0_12, %c0_13] : memref<1x128xf32, #tpu.memory_space<vmem>>, vector<1x128xf32>
    %17 = vector.broadcast %16 : vector<1x128xf32> to vector<2x128xf32>
    %18 = arith.addf %15, %17 : vector<2x128xf32>
    %c0_14 = arith.constant 0 : index
    %c0_15 = arith.constant 0 : index
    %19 = vector.load %arg7[%c0_14, %c0_15] : memref<2x128xf32, #tpu.memory_space<vmem>>, vector<2x128xf32>
    tpu.vector_store %arg7[%c0_14, %c0_15], %18 {strides = array<i32>} : memref<2x128xf32, #tpu.memory_space<vmem>>, vector<2x128xf32>,
    return
  }
  func.func @transform_0(%arg0: i32) -> (i32, i32) {
    %c0_i32 = arith.constant 0 : i32
    %c0_i32_0 = arith.constant 0 : i32
    return %arg0, %c0_i32 : i32, i32
  }
  func.func @transform_1(%arg0: i32) -> (i32, i32) {
    %c0_i32 = arith.constant 0 : i32
    %c0_i32_0 = arith.constant 0 : i32
    %c0_i32_1 = arith.constant 0 : i32
    return %c0_i32, %c0_i32_0 : i32, i32
  }
  func.func @transform_2(%arg0: i32) -> (i32, i32) {
    %c0_i32 = arith.constant 0 : i32
    %c0_i32_0 = arith.constant 0 : i32
    %c0_i32_1 = arith.constant 0 : i32
    return %c0_i32, %c0_i32_0 : i32, i32
  }
  func.func @transform_3(%arg0: i32) -> (i32, i32) {
    %c0_i32 = arith.constant 0 : i32
    %c0_i32_0 = arith.constant 0 : i32
    %c0_i32_1 = arith.constant 0 : i32
    return %c0_i32, %c0_i32_0 : i32, i32
  }
  func.func @transform_4(%arg0: i32) -> (i32, i32) {
    %c0_i32 = arith.constant 0 : i32
    %c0_i32_0 = arith.constant 0 : i32
    %c0_i32_1 = arith.constant 0 : i32
    return %c0_i32, %c0_i32_0 : i32, i32
  }
  func.func @transform_5(%arg0: i32) -> (i32, i32) {
    %c0_i32 = arith.constant 0 : i32
    %c0_i32_0 = arith.constant 0 : i32
    %c0_i32_1 = arith.constant 0 : i32
    return %c0_i32, %c0_i32_0 : i32, i32
  }
  func.func @transform_6(%arg0: i32) -> (i32, i32) {
    %c0_i32 = arith.constant 0 : i32
    %c0_i32_0 = arith.constant 0 : i32
    return %arg0, %c0_i32 : i32, i32
  }
}

</mosaic_0001>

<llo_original>
// kernel: tpu_custom_call.1
$region0: #{tpu_custom_call.1}
  #allocation0 [shape = 'u32[]', space=smem, size = 0x4, offset = 0x4, fixed_abs, tag = 'smem constant byte address 0x4 - core index']
  #allocation1 [shape = 'u32[72,128]{1,0:T(1,128)}', space=vmem, size = 0x9000, scoped, tag = 'internal scratch']
  %s0 = inlined_call_operand.vmem [shape: f32[32,20], index: 0, kind: input, shape index: {}]
  %s1 = inlined_call_operand.vmem [shape: f32[20,256], index: 1, kind: input, shape index: {}]
  %s2 = inlined_call_operand.vmem [shape: f32[1,256], index: 2, kind: input, shape index: {}]
  %s3 = inlined_call_operand.hbm [shape: f32[16,256], index: 3, kind: input, shape index: {}]
  %s4 = inlined_call_operand.hbm [shape: f32[256,128], index: 4, kind: input, shape index: {}]
  %s5 = inlined_call_operand.vmem [shape: f32[1,128], index: 5, kind: input, shape index: {}]
  %s6 = inlined_call_operand.hbm [shape: f32[2,128], index: 6, kind: output, shape index: {}]
  %s7 = sld [smem:[#allocation0]]
  $region42: #{tpu_custom_call.1} parent=0
    _
  %s9 = ssub.s32 1, %s7
  %s10 = scalar_select 0, %s9, %s7
  $region1: #{tpu_custom_call.1} parent=0
    #allocation2 [shape = 'u8[16384]{0}', space=vmem, size = 0x4000, scoped, tag = 'input window, operand 3, single buffered']
    #allocation3 [shape = 's32[1]{0}', space=sflag, size = 0x4, scoped, tag = 'scoped memory for tpu_custom_call.1']
    #allocation4 [shape = 's32[1]{0}', space=sflag, size = 0x4, scoped, tag = 'scoped memory for tpu_custom_call.1']
    #allocation5 [shape = 'u8[131072]{0}', space=vmem, size = 0x20000, scoped, tag = 'input window, operand 4, single buffered']
    #allocation6 [shape = 's32[1]{0}', space=sflag, size = 0x4, scoped, tag = 'scoped memory for tpu_custom_call.1']
    #allocation7 [shape = 'u8[1024]{0}', space=vmem, size = 0x400, scoped, tag = 'output window, operand 0, single buffered']
    %11 = vsyncpa [#allocation3], 0
    %12 = vsyncpa [#allocation6], 0
    %13 = vsyncpa [#allocation4], 0
    // Predicated region
    $region2: #{tpu_custom_call.1} parent=1 // pred_check
      _
    $region3: #{tpu_custom_call.1} parent=1 // pred_check_branch
      %15 = sbr.rel (0) target = $region5
    $region4: #{tpu_custom_call.1} parent=1 // pred_region
      _
    $region5: #{tpu_custom_call.1} parent=1 // pred_fallthru
      _
    // Predicated region
    $region6: #{tpu_custom_call.1} parent=1 // pred_check
      _
    $region7: #{tpu_custom_call.1} parent=1 // pred_check_branch
      %17 = sbr.rel (0) target = $region9
    $region8: #{tpu_custom_call.1} parent=1 // pred_region
      _
    $region9: #{tpu_custom_call.1} parent=1 // pred_fallthru
      _
    // Predicated region
    $region10: #{tpu_custom_call.1} parent=1 // pred_check
      _
    $region11: #{tpu_custom_call.1} parent=1 // pred_check_branch
      %19 = sbr.rel (0) target = $region13
    $region12: #{tpu_custom_call.1} parent=1 // pred_region
      _
    $region13: #{tpu_custom_call.1} parent=1 // pred_fallthru
      _
    // Predicated region
    $region14: #{tpu_custom_call.1} parent=1 // pred_check
      _
    $region15: #{tpu_custom_call.1} parent=1 // pred_check_branch
      %21 = sbr.rel (0) target = $region17
    $region16: #{tpu_custom_call.1} parent=1 // pred_region
      %23 = vsyncadd [#allocation3], 0
      %s24 = sshll.u32 %s3, 4
      %s25 = int_to_ptr.hbm [resolvable:$true] %s24
      %s26 = sshll.u32 [#allocation2], 4
      %s27 = int_to_ptr.vmem [resolvable:$true] %s26
      %32 = dma.hbm_to_vmem [thread:$0]  %s25, 512, %s27, [#allocation3], 256, 256, 16
    $region17: #{tpu_custom_call.1} parent=1 // pred_fallthru
      _
    // Predicated region
    $region18: #{tpu_custom_call.1} parent=1 // pred_check
      _
    $region19: #{tpu_custom_call.1} parent=1 // pred_check_branch
      %34 = sbr.rel (0) target = $region21
    $region20: #{tpu_custom_call.1} parent=1 // pred_region
      %36 = vsyncadd [#allocation6], 0
      %s37 = sshll.u32 %s4, 4
      %s38 = int_to_ptr.hbm [resolvable:$true] %s37
      %s39 = sshll.u32 [#allocation5], 4
      %s40 = int_to_ptr.vmem [resolvable:$true] %s39
      %45 = dma.hbm_to_vmem [thread:$0]  %s38, 4096, %s40, [#allocation6], 128, 128, 8
    $region21: #{tpu_custom_call.1} parent=1 // pred_fallthru
      _
    // Predicated region
    $region22: #{tpu_custom_call.1} parent=1 // pred_check
      _
    $region23: #{tpu_custom_call.1} parent=1 // pred_check_branch
      %47 = sbr.rel (0) target = $region25
    $region24: #{tpu_custom_call.1} parent=1 // pred_region
      _
    $region25: #{tpu_custom_call.1} parent=1 // pred_fallthru
      _
    // Predicated region
    $region26: #{tpu_custom_call.1} parent=1 // pred_check
      _
    $region27: #{tpu_custom_call.1} parent=1 // pred_check_branch
      %49 = sbr.rel (0) target = $region29
    $region28: #{tpu_custom_call.1} parent=1 // pred_region
      %51 = dma.done [#allocation3], 512
    $region29: #{tpu_custom_call.1} parent=1 // pred_fallthru
      _
    // Predicated region
    $region30: #{tpu_custom_call.1} parent=1 // pred_check
      _
    $region31: #{tpu_custom_call.1} parent=1 // pred_check_branch
      %53 = sbr.rel (0) target = $region33
    $region32: #{tpu_custom_call.1} parent=1 // pred_region
      %55 = dma.done [#allocation6], 4096
    $region33: #{tpu_custom_call.1} parent=1 // pred_fallthru
      _
    %v56 = vld [vmem:[%s0] sm:$0xff]
    %v57 = vld [vmem:[%s0 + $0x8] sm:$0xff]
    %v58 = vld [vmem:[%s0 + $0x10] sm:$0xff]
    %v59 = vld [vmem:[%s0 + $0x18] sm:$0xff]
    %v60 = vld [vmem:[%s1] sm:$0xff]
    %v61 = vld [vmem:[%s1 + $0x8] sm:$0xff]
    %v62 = vld [vmem:[%s1 + $0x10] sm:$0xff]
    %v63 = vld [vmem:[%s1 + $0x18] sm:$0xff]
    %v64 = vld [vmem:[%s1 + $0x20] sm:$0xf]
    %v65 = vld [vmem:[%s1 + $0x28] sm:$0xf]
    %v66 = vld [vmem:[%s2] sm:$0x3]
    %v68 = vperm.slane %v66, 0
    %v69 = vperm.slane %v66, 1
    %vm72 = vcmask 162816
    %v74 = vsel %vm72, %v56, 0
    %v77 = vsel %vm72, %v57, 0
    %v80 = vsel %vm72, %v58, 0
    %v83 = vsel %vm72, %v59, 0
    %vm85 = vcmask 1043456
    %v87 = vsel %vm85, %v64, 0
    %v90 = vsel %vm85, %v65, 0
    %92 = vmatpush.msra.mxu0 0.0
    %93 = vmatpush.msra.mxu0 0.0
    %94 = vmatpush.msra.mxu0 0.0
    %95 = vmatpush.msra.mxu0 0.0
    %96 = vmatpush.msra.mxu0 0.0
    %97 = vmatpush.msra.mxu0 0.0
    %98 = vmatpush.msra.mxu0 0.0
    %99 = vmatpush.msra.mxu0 0.0
    %100 = vmatpush.msra.mxu0 0.0
    %101 = vmatpush.msra.mxu0 0.0
    %102 = vmatpush.msra.mxu0 0.0
    %103 = vmatpush.msra.mxu0 0.0
    %104 = vmatpush.msra.mxu0 0.0
    %105 = vmatpush.msra.mxu0 %v87
    %106 = vmatpush.msra.mxu0 %v62
    %107 = vmatpush.msra.mxu0 %v60
    %108 = vmatmul.f32.gmra.mxu0 %v74
    %v109 = vpop.f32.mrf.mxu0
    %v110 = vadd.f32 %v68, %v109
    %111 = vmatmul.f32.gmra.mxu0 %v77
    %v112 = vpop.f32.mrf.mxu0
    %v113 = vadd.f32 %v68, %v112
    %114 = vmatmul.f32.gmra.mxu0 %v80
    %v115 = vpop.f32.mrf.mxu0
    %v116 = vadd.f32 %v68, %v115
    %117 = vmatmul.f32.gmra.mxu0 %v83
    %v118 = vpop.f32.mrf.mxu0
    %v119 = vadd.f32 %v68, %v118
    %120 = vdwg.mxu0
    %121 = vmatpush.msra.mxu0 0.0
    %122 = vmatpush.msra.mxu0 0.0
    %123 = vmatpush.msra.mxu0 0.0
    %124 = vmatpush.msra.mxu0 0.0
    %125 = vmatpush.msra.mxu0 0.0
    %126 = vmatpush.msra.mxu0 0.0
    %127 = vmatpush.msra.mxu0 0.0
    %128 = vmatpush.msra.mxu0 0.0
    %129 = vmatpush.msra.mxu0 0.0
    %130 = vmatpush.msra.mxu0 0.0
    %131 = vmatpush.msra.mxu0 0.0
    %132 = vmatpush.msra.mxu0 0.0
    %133 = vmatpush.msra.mxu0 0.0
    %134 = vmatpush.msra.mxu0 %v90
    %135 = vmatpush.msra.mxu0 %v63
    %136 = vmatpush.msra.mxu0 %v61
    %137 = vmatmul.f32.gmra.mxu0 %v74
    %v138 = vpop.f32.mrf.mxu0
    %v139 = vadd.f32 %v69, %v138
    %140 = vmatmul.f32.gmra.mxu0 %v77
    %v141 = vpop.f32.mrf.mxu0
    %v142 = vadd.f32 %v69, %v141
    %143 = vmatmul.f32.gmra.mxu0 %v80
    %v144 = vpop.f32.mrf.mxu0
    %v145 = vadd.f32 %v69, %v144
    %146 = vmatmul.f32.gmra.mxu0 %v83
    %v147 = vpop.f32.mrf.mxu0
    %v148 = vadd.f32 %v69, %v147
    %149 = vdwg.mxu0
    %v150 = vmax.f32 %v110, 0.0
    %v151 = vmax.f32 %v139, 0.0
    %v152 = vmax.f32 %v113, 0.0
    %v153 = vmax.f32 %v142, 0.0
    %v154 = vmax.f32 %v116, 0.0
    %v155 = vmax.f32 %v145, 0.0
    %v156 = vmax.f32 %v119, 0.0
    %v157 = vmax.f32 %v148, 0.0
    %v158 = vld [vmem:[#allocation2] sm:$0xff]
    %v159 = vld [vmem:[#allocation2 + $0x8] sm:$0xff]
    %v160 = vld [vmem:[#allocation2 + $0x10] sm:$0xff]
    %v161 = vld [vmem:[#allocation2 + $0x18] sm:$0xff]
    %v162 = vmul.f32 %v150, %v158
    %v163 = vmul.f32 %v151, %v159
    %v164 = vmul.f32 %v152, %v160
    %v165 = vmul.f32 %v153, %v161
    %v166 = vmul.f32 %v154, %v158
    %v167 = vmul.f32 %v155, %v159
    %v168 = vmul.f32 %v156, %v160
    %v169 = vmul.f32 %v157, %v161
    %v170 = vmax.f32 %v162, %v164
    %v171 = vrot.slane %v170, 4
    %v172 = vmax.f32 %v170, %v171
    %v173 = vrot.slane %v172, 2
    %v174 = vmax.f32 %v172, %v173
    %v175 = vrot.slane %v174, 1
    %v176 = vmax.f32 %v174, %v175
    %v177 = vmax.f32 %v163, %v165
    %v178 = vrot.slane %v177, 4
    %v179 = vmax.f32 %v177, %v178
    %v180 = vrot.slane %v179, 2
    %v181 = vmax.f32 %v179, %v180
    %v182 = vrot.slane %v181, 1
    %v183 = vmax.f32 %v181, %v182
    %v184 = vmax.f32 %v166, %v168
    %v185 = vrot.slane %v184, 4
    %v186 = vmax.f32 %v184, %v185
    %v187 = vrot.slane %v186, 2
    %v188 = vmax.f32 %v186, %v187
    %v189 = vrot.slane %v188, 1
    %v190 = vmax.f32 %v188, %v189
    %v191 = vmax.f32 %v167, %v169
    %v192 = vrot.slane %v191, 4
    %v193 = vmax.f32 %v191, %v192
    %v194 = vrot.slane %v193, 2
    %v195 = vmax.f32 %v193, %v194
    %v196 = vrot.slane %v195, 1
    %v197 = vmax.f32 %v195, %v196
    %v198 = vld [vmem:[#allocation5] sm:$0xff]
    %v199 = vld [vmem:[#allocation5 + $0x8] sm:$0xff]
    %v200 = vld [vmem:[#allocation5 + $0x10] sm:$0xff]
    %v201 = vld [vmem:[#allocation5 + $0x18] sm:$0xff]
    %v202 = vld [vmem:[#allocation5 + $0x20] sm:$0xff]
    %v203 = vld [vmem:[#allocation5 + $0x28] sm:$0xff]
    %v204 = vld [vmem:[#allocation5 + $0x30] sm:$0xff]
    %v205 = vld [vmem:[#allocation5 + $0x38] sm:$0xff]
    %v206 = vld [vmem:[#allocation5 + $0x40] sm:$0xff]
    %v207 = vld [vmem:[#allocation5 + $0x48] sm:$0xff]
    %v208 = vld [vmem:[#allocation5 + $0x50] sm:$0xff]
    %v209 = vld [vmem:[#allocation5 + $0x58] sm:$0xff]
    %v210 = vld [vmem:[#allocation5 + $0x60] sm:$0xff]
    %v211 = vld [vmem:[#allocation5 + $0x68] sm:$0xff]
    %v212 = vld [vmem:[#allocation5 + $0x70] sm:$0xff]
    %v213 = vld [vmem:[#allocation5 + $0x78] sm:$0xff]
    %v214 = vld [vmem:[#allocation5 + $0x80] sm:$0xff]
    %v215 = vld [vmem:[#allocation5 + $0x88] sm:$0xff]
    %v216 = vld [vmem:[#allocation5 + $0x90] sm:$0xff]
    %v217 = vld [vmem:[#allocation5 + $0x98] sm:$0xff]
    %v218 = vld [vmem:[#allocation5 + $0xa0] sm:$0xff]
    %v219 = vld [vmem:[#allocation5 + $0xa8] sm:$0xff]
    %v220 = vld [vmem:[#allocation5 + $0xb0] sm:$0xff]
    %v221 = vld [vmem:[#allocation5 + $0xb8] sm:$0xff]
    %v222 = vld [vmem:[#allocation5 + $0xc0] sm:$0xff]
    %v223 = vld [vmem:[#allocation5 + $0xc8] sm:$0xff]
    %v224 = vld [vmem:[#allocation5 + $0xd0] sm:$0xff]
    %v225 = vld [vmem:[#allocation5 + $0xd8] sm:$0xff]
    %v226 = vld [vmem:[#allocation5 + $0xe0] sm:$0xff]
    %v227 = vld [vmem:[#allocation5 + $0xe8] sm:$0xff]
    %v228 = vld [vmem:[#allocation5 + $0xf0] sm:$0xff]
    %v229 = vld [vmem:[#allocation5 + $0xf8] sm:$0xff]
    %v230 = vld [vmem:[%s5] sm:$0x1]
    %v232 = vperm.slane %v230, 0
    %vm238 = vcmask 1041409
    %v239 = vsel %vm238, %v190, %v176
    %v240 = vsel %vm238, %v197, %v183
    %243 = vmatpush.msra.mxu0 %v213
    %244 = vmatpush.msra.mxu0 %v212
    %245 = vmatpush.msra.mxu0 %v211
    %246 = vmatpush.msra.mxu0 %v210
    %247 = vmatpush.msra.mxu0 %v209
    %248 = vmatpush.msra.mxu0 %v208
    %249 = vmatpush.msra.mxu0 %v207
    %250 = vmatpush.msra.mxu0 %v206
    %251 = vmatpush.msra.mxu0 %v205
    %252 = vmatpush.msra.mxu0 %v204
    %253 = vmatpush.msra.mxu0 %v203
    %254 = vmatpush.msra.mxu0 %v202
    %255 = vmatpush.msra.mxu0 %v201
    %256 = vmatpush.msra.mxu0 %v200
    %257 = vmatpush.msra.mxu0 %v199
    %258 = vmatpush.msra.mxu0 %v198
    %259 = vmatmul.f32.gmra.mxu0 %v239
    %v260 = vpop.f32.mrf.mxu0
    %v261 = vadd.f32 %v232, %v260
    %262 = vdwg.mxu0
    %263 = vmatpush.msra.mxu0 %v229
    %264 = vmatpush.msra.mxu0 %v228
    %265 = vmatpush.msra.mxu0 %v227
    %266 = vmatpush.msra.mxu0 %v226
    %267 = vmatpush.msra.mxu0 %v225
    %268 = vmatpush.msra.mxu0 %v224
    %269 = vmatpush.msra.mxu0 %v223
    %270 = vmatpush.msra.mxu0 %v222
    %271 = vmatpush.msra.mxu0 %v221
    %272 = vmatpush.msra.mxu0 %v220
    %273 = vmatpush.msra.mxu0 %v219
    %274 = vmatpush.msra.mxu0 %v218
    %275 = vmatpush.msra.mxu0 %v217
    %276 = vmatpush.msra.mxu0 %v216
    %277 = vmatpush.msra.mxu0 %v215
    %278 = vmatpush.msra.mxu0 %v214
    %279 = vmatmul.f32.gmra.mxu0 %v240
    %v280 = vpop.f32.mrf.mxu0
    %v281 = vadd.f32 %v261, %v280
    %282 = vdwg.mxu0
    %283 = vst [vmem:[#allocation7] sm:$0x3] %v281
    // Predicated region
    $region34: #{tpu_custom_call.1} parent=1 // pred_check
      _
    $region35: #{tpu_custom_call.1} parent=1 // pred_check_branch
      %285 = sbr.rel (0) target = $region37
    $region36: #{tpu_custom_call.1} parent=1 // pred_region
      %287 = vsyncadd [#allocation4], 0
      %s289 = sshll.u32 [#allocation7], 4
      %s290 = int_to_ptr.vmem [resolvable:$true] %s289
      %s291 = sshll.u32 %s6, 4
      %s292 = int_to_ptr.hbm [resolvable:$true] %s291
      %294 = dma.vmem_to_hbm [thread:$0]  %s290, 32, %s292, [#allocation4]
    $region37: #{tpu_custom_call.1} parent=1 // pred_fallthru
      _
    // Predicated region
    $region38: #{tpu_custom_call.1} parent=1 // pred_check
      _
    $region39: #{tpu_custom_call.1} parent=1 // pred_check_branch
      %296 = sbr.rel (0) target = $region41
    $region40: #{tpu_custom_call.1} parent=1 // pred_region
      %298 = dma.done [#allocation4], 32
    $region41: #{tpu_custom_call.1} parent=1 // pred_fallthru
      _
    %299 = vsyncpa [#allocation3], 1
    %300 = vsyncpa [#allocation6], 1
    %301 = vsyncpa [#allocation4], 1

</llo_original>
